<compile_context>
chip_gen: v5e
topology: v5e:2x2
jax: 0.10.0
libtpu: 0.0.40
codegen_flags: <defaults>
</compile_context>

<pallas_src>
import jax
import jax.numpy as jnp
from jax.experimental import pallas as pl
from jax.experimental.pallas import tpu as pltpu


def _starrelu_kernel(scale_ref, bias_ref, x_ref, o_ref):
    # scale_ref / bias_ref: (1,) f32 scalars in SMEM.
    s = scale_ref[0]
    b = bias_ref[0]
    x = x_ref[...]
    r = jnp.maximum(x, jnp.zeros((), x.dtype)).astype(jnp.float32)
    o_ref[...] = (s * r * r + b).astype(o_ref.dtype)


_LANE_CANDIDATES = (4096, 2048, 1024, 512, 256, 128)


def _sublane(dtype):
    # Sublane packing multiple per dtype width (f32: 8, bf16: 16, int8/fp8: 32).
    return {4: 8, 2: 16, 1: 32}.get(jnp.dtype(dtype).itemsize, 8)


def _chip_config():
    """Returns (block_bytes, dual_tc)."""
    kind = ""
    try:
        kind = jax.devices()[0].device_kind.lower()
    except Exception:
        pass
    if "v7" in kind or "tpu7" in kind:
        # v7x: 2 TensorCores/chip, ~3.2 TB/s HBM.  4 MiB blocks -> ~16 MiB
        # double-buffered footprint, inside the 32 MiB scoped-VMEM default.
        return 4 * 1024 * 1024, True
    # v5e / v6e (single TC): 2 MiB blocks, ~8 MiB footprint, under the
    # 16 MiB (v5e) / 32 MiB (v6e) scoped-VMEM defaults.
    return 2 * 1024 * 1024, False


def _round_up(a, b):
    return -(-a // b) * b


def _pick_rows(M, L, itemsize, sub, block_bytes, dual_tc):
    # Largest sublane-multiple row tile within the per-block byte budget.
    rows_cap = max(sub, (block_bytes // (L * itemsize)) // sub * sub)
    if not dual_tc:
        # Single-TC chips: no forced split; one full-slab block when it fits.
        return M if rows_cap >= M else rows_cap
    # Dual-TC (v7x): want >= 2 balanced steps per TensorCore when possible.
    if M < 4 * sub:
        return M if rows_cap >= M else rows_cap
    g = max(pl.cdiv(M, rows_cap), 4)
    if g % 2:
        g += 1  # even step count -> balanced split across the two TCs
    rows = max(sub, _round_up(pl.cdiv(M, g), sub))
    return min(rows, rows_cap)


def _starrelu_2d(x2d, scale_f32, bias_f32, *, donate_x=False):
    M, L = x2d.shape
    dtype = x2d.dtype
    itemsize = jnp.dtype(dtype).itemsize
    sub = _sublane(dtype)
    block_bytes, dual_tc = _chip_config()

    rows = _pick_rows(M, L, itemsize, sub, block_bytes, dual_tc)
    # (8,128)-rule: `rows` is either a multiple of the sublane packing or
    # equals the full array dim M; `L` is always a multiple of 128.  Ragged
    # last blocks are handled by Pallas edge masking — safe here because the
    # op is purely elementwise (no cross-row reduction over padded reads).
    grid = (pl.cdiv(M, rows),)

    # TODO(synk): on v7x, confirm in xprof that the "parallel" axis really is
    # sharded across both TensorCores; if not, switch to pltpu.CORE_PARALLEL.
    return pl.pallas_call(
        _starrelu_kernel,
        out_shape=jax.ShapeDtypeStruct((M, L), dtype),
        grid_spec=pltpu.PrefetchScalarGridSpec(
            num_scalar_prefetch=0,
            grid=grid,
            in_specs=[
                pl.BlockSpec(memory_space=pltpu.SMEM),  # scale (1,) f32
                pl.BlockSpec(memory_space=pltpu.SMEM),  # bias  (1,) f32
                pl.BlockSpec((rows, L), lambda i: (i, 0)),
            ],
            out_specs=pl.BlockSpec((rows, L), lambda i: (i, 0)),
        ),
        compiler_params=pltpu.CompilerParams(
            dimension_semantics=("parallel",),
        ),
        # Footprint/latency win only (HBM traffic unchanged); enable when the
        # caller can donate x.
        input_output_aliases=({2: 0} if donate_x else {}),
    )(scale_f32, bias_f32, x2d)


def starrelu(x, scale, bias):
    """x: any-shape (e.g. NCHW) float array. scale/bias: (1,) parameters."""
    orig_shape = x.shape
    dtype = x.dtype
    total = x.size

    scale_f32 = scale.reshape(-1)[:1].astype(jnp.float32)
    bias_f32 = bias.reshape(-1)[:1].astype(jnp.float32)

    sub = _sublane(dtype)

    # Pick the widest lane count that divides the flattened size, preferring
    # one that leaves at least `sub` rows.
    lanes = None
    for cand in _LANE_CANDIDATES:
        if total % cand == 0 and total // cand >= sub:
            lanes = cand
            break
    if lanes is None:
        for cand in _LANE_CANDIDATES:
            if total % cand == 0:
                lanes = cand
                break

    if lanes is not None:
        # Zero-copy hot path: contiguous reshape in, contiguous reshape out.
        x2d = x.reshape(total // lanes, lanes)
        out2d = _starrelu_2d(x2d, scale_f32, bias_f32)
        return out2d.reshape(orig_shape)

    # Rare fallback: total not a multiple of 128.  Run the zero-copy kernel on
    # the largest 128-multiple prefix and do the (<128 element) tail in plain
    # jnp — ~1x HBM traffic instead of the old pad + slice (~3x) path.
    # TODO(synk): mask the ragged tail in-kernel (scalar-prefetched length +
    # pltpu.store lane mask) to also drop the concatenate stitch copy.
    x_flat = x.reshape(-1)
    prefix = (total // 128) * 128

    def _tail_jnp(v):
        r = jnp.maximum(v, 0).astype(jnp.float32)
        return (scale_f32[0] * r * r + bias_f32[0]).astype(dtype)

    if prefix == 0:
        return _tail_jnp(x_flat).reshape(orig_shape)

    lanes = 128
    for cand in _LANE_CANDIDATES:
        if prefix % cand == 0 and prefix // cand >= sub:
            lanes = cand
            break
    head2d = _starrelu_2d(
        x_flat[:prefix].reshape(prefix // lanes, lanes), scale_f32, bias_f32
    )
    tail = _tail_jnp(x_flat[prefix:])
    return jnp.concatenate([head2d.reshape(-1), tail]).reshape(orig_shape)


if __name__ == "__main__":
    key = jax.random.PRNGKey(0)
    # NCHW input, small shape consistent with the module.
    x = jax.random.normal(key, (2, 4, 16, 16), dtype=jnp.float32)

    # Matches nn.Parameter(torch.ones(1)) / nn.Parameter(torch.zeros(1)).
    scale = jnp.ones((1,), dtype=jnp.float32)
    bias = jnp.zeros((1,), dtype=jnp.float32)

    out = starrelu(x, scale, bias)
    out = jax.block_until_ready(out)

    # Reference check (plain JAX).
    ref = scale[0] * jnp.maximum(x, 0.0) ** 2 + bias[0]
    assert out.shape == x.shape and out.dtype == x.dtype
    assert jnp.allclose(out, ref, atol=1e-6, rtol=1e-6)

    # Exercise the non-128-multiple fallback path (prefix kernel + jnp tail).
    x_odd = jax.random.normal(jax.random.PRNGKey(1), (3, 5, 21), dtype=jnp.float32)
    out_odd = jax.block_until_ready(starrelu(x_odd, scale, bias))
    ref_odd = scale[0] * jnp.maximum(x_odd, 0.0) ** 2 + bias[0]
    assert out_odd.shape == x_odd.shape
    assert jnp.allclose(out_odd, ref_odd, atol=1e-6, rtol=1e-6)

    print("KERNEL_OK")
</pallas_src>

<mosaic_0001>
module attributes {stable_mosaic.version = 11 : i64} {
  func.func @_starrelu_kernel(%arg0: i32, %arg1: memref<1xf32, #tpu.memory_space<smem>>, %arg2: memref<1xf32, #tpu.memory_space<smem>>, %arg3: memref<8x256xf32, #tpu.memory_space<vmem>>, %arg4: memref<8x256xf32, #tpu.memory_space<vmem>>) attributes {dimension_semantics = [#tpu.dimension_semantics<parallel>], iteration_bounds = array<i64: 1>, scalar_prefetch = 0 : i64, scratch_operands = 0 : i64, tpu.core_type = #tpu.core_type<tc>, window_params = [{transform_indices = @transform_0, window_bounds = array<i64: 1>}, {transform_indices = @transform_1, window_bounds = array<i64: 1>}, {transform_indices = @transform_2, window_bounds = array<i64: 8, 256>}, {transform_indices = @transform_3, window_bounds = array<i64: 8, 256>}]} {
    %c0 = arith.constant 0 : index
    %0 = memref.load %arg1[%c0] : memref<1xf32, #tpu.memory_space<smem>>
    %c0_0 = arith.constant 0 : index
    %1 = memref.load %arg2[%c0_0] : memref<1xf32, #tpu.memory_space<smem>>
    %c0_1 = arith.constant 0 : index
    %c0_2 = arith.constant 0 : index
    %2 = vector.load %arg3[%c0_1, %c0_2] : memref<8x256xf32, #tpu.memory_space<vmem>>, vector<8x256xf32>
    %cst = arith.constant 0.000000e+00 : f32
    %3 = vector.broadcast %cst : f32 to vector<8x256xf32>
    %4 = arith.maximumf %2, %3 : vector<8x256xf32>
    %5 = vector.broadcast %0 : f32 to vector<8x256xf32>
    %6 = arith.mulf %5, %4 : vector<8x256xf32>
    %7 = arith.mulf %6, %4 : vector<8x256xf32>
    %8 = vector.broadcast %1 : f32 to vector<8x256xf32>
    %9 = arith.addf %7, %8 : vector<8x256xf32>
    %c0_3 = arith.constant 0 : index
    %c0_4 = arith.constant 0 : index
    %10 = vector.load %arg4[%c0_3, %c0_4] : memref<8x256xf32, #tpu.memory_space<vmem>>, vector<8x256xf32>
    tpu.vector_store %arg4[%c0_3, %c0_4], %9 {strides = array<i32>} : memref<8x256xf32, #tpu.memory_space<vmem>>, vector<8x256xf32>,
    return
  }
  func.func @transform_0(%arg0: i32) -> i32 {
    %c0_i32 = arith.constant 0 : i32
    %c0_i32_0 = arith.constant 0 : i32
    return %c0_i32 : i32
  }
  func.func @transform_1(%arg0: i32) -> i32 {
    %c0_i32 = arith.constant 0 : i32
    %c0_i32_0 = arith.constant 0 : i32
    return %c0_i32 : i32
  }
  func.func @transform_2(%arg0: i32) -> (i32, i32) {
    %c0_i32 = arith.constant 0 : i32
    %c0_i32_0 = arith.constant 0 : i32
    return %arg0, %c0_i32 : i32, i32
  }
  func.func @transform_3(%arg0: i32) -> (i32, i32) {
    %c0_i32 = arith.constant 0 : i32
    %c0_i32_0 = arith.constant 0 : i32
    return %arg0, %c0_i32 : i32, i32
  }
}

</mosaic_0001>

<llo_original>
// kernel: tpu_custom_call.1
$region0: #{tpu_custom_call.1}
  #allocation0 [shape = 'u32[]', space=smem, size = 0x4, offset = 0x4, fixed_abs, tag = 'smem constant byte address 0x4 - core index']
  #allocation1 [shape = 'u32[72,128]{1,0:T(1,128)}', space=vmem, size = 0x9000, scoped, tag = 'internal scratch']
  #allocation2 [shape = 'f32[1]{0:T(128)S(6)}', space=smem, size = 0x200, scoped, tag = 'scoped memory for tpu_custom_call.1']
  #allocation3 [shape = 'f32[1]{0:T(128)S(6)}', space=smem, size = 0x200, scoped, tag = 'scoped memory for tpu_custom_call.1']
  %s0 = inlined_call_operand.<no memory space> [shape: f32[1], index: 0, kind: input, shape index: {}]
  %s1 = inlined_call_operand.<no memory space> [shape: f32[1], index: 1, kind: input, shape index: {}]
  %s2 = inlined_call_operand.hbm [shape: f32[8,256], index: 2, kind: input, shape index: {}]
  %s3 = inlined_call_operand.hbm [shape: f32[8,256], index: 3, kind: output, shape index: {}]
  %s4 = sld [smem:[#allocation0]]
  $region26: #{tpu_custom_call.1} parent=0
    _
  %s6 = ssub.s32 1, %s4
  %s7 = scalar_select 0, %s6, %s4
  %8 = sst [smem:[#allocation2]] %s0
  %9 = sst [smem:[#allocation3]] %s1
  $region1: #{tpu_custom_call.1} parent=0
    #allocation4 [shape = 'u8[8192]{0}', space=vmem, size = 0x2000, scoped, tag = 'input window, operand 2, single buffered']
    #allocation5 [shape = 's32[1]{0}', space=sflag, size = 0x4, scoped, tag = 'scoped memory for tpu_custom_call.1']
    #allocation6 [shape = 's32[1]{0}', space=sflag, size = 0x4, scoped, tag = 'scoped memory for tpu_custom_call.1']
    #allocation7 [shape = 'u8[8192]{0}', space=vmem, size = 0x2000, scoped, tag = 'output window, operand 0, single buffered']
    %10 = vsyncpa [#allocation5], 0
    %11 = vsyncpa [#allocation6], 0
    // Predicated region
    $region2: #{tpu_custom_call.1} parent=1 // pred_check
      _
    $region3: #{tpu_custom_call.1} parent=1 // pred_check_branch
      %13 = sbr.rel (0) target = $region5
    $region4: #{tpu_custom_call.1} parent=1 // pred_region
      _
    $region5: #{tpu_custom_call.1} parent=1 // pred_fallthru
      _
    // Predicated region
    $region6: #{tpu_custom_call.1} parent=1 // pred_check
      _
    $region7: #{tpu_custom_call.1} parent=1 // pred_check_branch
      %15 = sbr.rel (0) target = $region9
    $region8: #{tpu_custom_call.1} parent=1 // pred_region
      _
    $region9: #{tpu_custom_call.1} parent=1 // pred_fallthru
      _
    // Predicated region
    $region10: #{tpu_custom_call.1} parent=1 // pred_check
      _
    $region11: #{tpu_custom_call.1} parent=1 // pred_check_branch
      %17 = sbr.rel (0) target = $region13
    $region12: #{tpu_custom_call.1} parent=1 // pred_region
      %19 = vsyncadd [#allocation5], 0
      %s21 = sshll.u32 %s2, 4
      %s22 = int_to_ptr.hbm [resolvable:$true] %s21
      %s23 = sshll.u32 [#allocation4], 4
      %s24 = int_to_ptr.vmem [resolvable:$true] %s23
      %26 = dma.hbm_to_vmem [thread:$0]  %s22, 256, %s24, [#allocation5]
    $region13: #{tpu_custom_call.1} parent=1 // pred_fallthru
      _
    // Predicated region
    $region14: #{tpu_custom_call.1} parent=1 // pred_check
      _
    $region15: #{tpu_custom_call.1} parent=1 // pred_check_branch
      %28 = sbr.rel (0) target = $region17
    $region16: #{tpu_custom_call.1} parent=1 // pred_region
      %30 = dma.done [#allocation5], 256
    $region17: #{tpu_custom_call.1} parent=1 // pred_fallthru
      _
    %s31 = sld [smem:[#allocation2]]
    %s32 = sld [smem:[#allocation3]]
    %v33 = vld [vmem:[#allocation4] sm:$0xff]
    %v34 = vld [vmem:[#allocation4 + $0x8] sm:$0xff]
    %v35 = vmax.f32 %v33, 0.0
    %v36 = vmax.f32 %v34, 0.0
    %v37 = vstv %s31
    %v38 = vmul.f32 %v37, %v35
    %v39 = vmul.f32 %v37, %v36
    %v40 = vmul.f32 %v38, %v35
    %v41 = vmul.f32 %v39, %v36
    %v42 = vstv %s32
    %v43 = vadd.f32 %v40, %v42
    %v44 = vadd.f32 %v41, %v42
    %45 = vst [vmem:[#allocation7] sm:$0xff] %v43
    %46 = vst [vmem:[#allocation7 + $0x8] sm:$0xff] %v44
    // Predicated region
    $region18: #{tpu_custom_call.1} parent=1 // pred_check
      _
    $region19: #{tpu_custom_call.1} parent=1 // pred_check_branch
      %48 = sbr.rel (0) target = $region21
    $region20: #{tpu_custom_call.1} parent=1 // pred_region
      %50 = vsyncadd [#allocation6], 0
      %s52 = sshll.u32 [#allocation7], 4
      %s53 = int_to_ptr.vmem [resolvable:$true] %s52
      %s54 = sshll.u32 %s3, 4
      %s55 = int_to_ptr.hbm [resolvable:$true] %s54
      %57 = dma.vmem_to_hbm [thread:$0]  %s53, 256, %s55, [#allocation6]
    $region21: #{tpu_custom_call.1} parent=1 // pred_fallthru
      _
    // Predicated region
    $region22: #{tpu_custom_call.1} parent=1 // pred_check
      _
    $region23: #{tpu_custom_call.1} parent=1 // pred_check_branch
      %59 = sbr.rel (0) target = $region25
    $region24: #{tpu_custom_call.1} parent=1 // pred_region
      %61 = dma.done [#allocation6], 256
    $region25: #{tpu_custom_call.1} parent=1 // pred_fallthru
      _
    %62 = vsyncpa [#allocation5], 1
    %63 = vsyncpa [#allocation6], 1

</llo_original>
